<compile_context>
chip_gen: v6e
topology: v6e:2x2x1
jax: 0.10.0
libtpu: 0.0.40
codegen_flags: <defaults>
</compile_context>

<pallas_src>
import jax
import jax.numpy as jnp
from jax.experimental import pallas as pl
from jax.experimental.pallas import tpu as pltpu

CIN_RAW = 3      # xyz channels fed to the kernel (after weight folding)
CIN_CAT = 6      # original Conv2d input channels ([x,y,z,x,y,z])
COUT = 64


def _conv1x1_kernel(x_ref, w_ref, b_ref, o_ref):
    # x_ref: (3, tn)   w_ref: (64, 3)   b_ref: (64, 1)   o_ref: (64, tn)
    acc = jnp.dot(w_ref[...], x_ref[...], preferred_element_type=jnp.float32)
    o_ref[...] = (acc + b_ref[...]).astype(o_ref.dtype)


def _pick_tn(N, max_tn=8192):
    """Largest 128-multiple divisor of N that is <= max_tn; tn=N if N is not a
    multiple of 128 (full-extent block is always legal)."""
    if N % 128 != 0:
        return N
    tn = (min(N, max_tn) // 128) * 128
    while N % tn != 0:
        tn -= 128
    return tn


def conv1x1_cf(x_bcn, w_folded, bias_2d, *, tn=None, out_dtype=jnp.float32):
    """x_bcn: (B, 3, N) f32; w_folded: (64, 3); bias_2d: (64, 1) -> (B, 64, N)."""
    B, cin, N = x_bcn.shape
    if tn is None:
        tn = _pick_tn(N)
    assert N % tn == 0, "tn must divide N (use _pick_tn)"

    out_bytes = B * COUT * N * jnp.dtype(out_dtype).itemsize
    cost = pl.CostEstimate(
        flops=2 * B * COUT * cin * N,
        bytes_accessed=4 * (B * cin * N + COUT * cin + COUT) + out_bytes,
        transcendentals=0,
    )

    return pl.pallas_call(
        _conv1x1_kernel,
        out_shape=jax.ShapeDtypeStruct((B, COUT, N), out_dtype),
        grid=(B, N // tn),
        in_specs=[
            pl.BlockSpec((pl.Squeezed(), cin, tn), lambda b, n: (b, 0, n)),
            pl.BlockSpec((COUT, cin), lambda b, n: (0, 0)),
            pl.BlockSpec((COUT, 1), lambda b, n: (0, 0)),
        ],
        out_specs=pl.BlockSpec((pl.Squeezed(), COUT, tn), lambda b, n: (b, 0, n)),
        compiler_params=pltpu.CompilerParams(
            dimension_semantics=("parallel", "parallel")),  # B x N-tiles shard across TCs
        cost_estimate=cost,
    )(x_bcn, w_folded, bias_2d)


def prepare_params(weight_oc, bias_o):
    """Fold the [xyz, xyz] channel concat into the Conv2d weight. Do this once,
    outside the jitted forward."""
    w_folded = weight_oc[:, :CIN_RAW] + weight_oc[:, CIN_RAW:]   # (64, 3)
    bias_2d = bias_o.reshape(COUT, 1)
    return w_folded, bias_2d


def testnet_forward(xyz, w_folded, bias_2d):
    """xyz: (1, B, 3, N) like the PyTorch module. Returns (B, 64, N, 1)."""
    x = jnp.reshape(xyz, xyz.shape[1:])          # squeeze(0): (B, 3, N), metadata-only
    out_bon = conv1x1_cf(x, w_folded, bias_2d)   # (B, 64, N)  -- Pallas hot path
    return out_bon[..., None]                    # (B, 64, N, 1), metadata-only


if __name__ == "__main__":
    key = jax.random.PRNGKey(0)
    k_x, k_w, k_b = jax.random.split(key, 3)

    B, C, N = 2, 3, 128
    xyz = jax.random.normal(k_x, (1, B, C, N), dtype=jnp.float32)

    # Deterministic Conv2d(6, 64, 1) parameters (weight (64, 6, 1, 1), bias (64,)).
    weight_4d = jax.random.normal(k_w, (COUT, CIN_CAT, 1, 1), dtype=jnp.float32) * 0.1
    bias = jax.random.normal(k_b, (COUT,), dtype=jnp.float32) * 0.1
    weight = weight_4d[:, :, 0, 0]               # (64, 6)

    w_folded, bias_2d = prepare_params(weight, bias)
    fwd = jax.jit(testnet_forward)
    out = jax.block_until_ready(fwd(xyz, w_folded, bias_2d))
    assert out.shape == (B, COUT, N, 1), out.shape

    # Pure-JAX reference of the ORIGINAL (unfolded) 1x1-conv semantics.
    x2_ref = jnp.concatenate([xyz[0], xyz[0]], axis=1)            # (B, 6, N)
    ref = jnp.einsum("oc,bcn->bon", weight, x2_ref) + bias[None, :, None]
    assert jnp.allclose(out[..., 0], ref, atol=1e-4, rtol=1e-4)

    print("KERNEL_OK")
</pallas_src>

<mosaic_0001>
module attributes {stable_mosaic.version = 11 : i64} {
  func.func @_conv1x1_kernel(%arg0: i32, %arg1: i32, %arg2: memref<1x3x128xf32, #tpu.memory_space<vmem>>, %arg3: memref<64x3xf32, #tpu.memory_space<vmem>>, %arg4: memref<64x1xf32, #tpu.memory_space<vmem>>, %arg5: memref<1x64x128xf32, #tpu.memory_space<vmem>>) attributes {dimension_semantics = [#tpu.dimension_semantics<parallel>, #tpu.dimension_semantics<parallel>], iteration_bounds = array<i64: 2, 1>, scalar_prefetch = 0 : i64, scratch_operands = 0 : i64, tpu.core_type = #tpu.core_type<tc>, window_params = [{transform_indices = @transform_0, window_bounds = array<i64: 1, 3, 128>}, {pipeline_mode = #tpu.pipeline_mode<synchronous>, transform_indices = @transform_1, window_bounds = array<i64: 64, 3>}, {pipeline_mode = #tpu.pipeline_mode<synchronous>, transform_indices = @transform_2, window_bounds = array<i64: 64, 1>}, {transform_indices = @transform_3, window_bounds = array<i64: 1, 64, 128>}]} {
    %c0 = arith.constant 0 : index
    %c0_0 = arith.constant 0 : index
    %0 = vector.load %arg3[%c0, %c0_0] : memref<64x3xf32, #tpu.memory_space<vmem>>, vector<64x3xf32>
    %c0_1 = arith.constant 0 : index
    %c0_2 = arith.constant 0 : index
    %c0_3 = arith.constant 0 : index
    %1 = vector.load %arg2[%c0_1, %c0_2, %c0_3] : memref<1x3x128xf32, #tpu.memory_space<vmem>>, vector<1x3x128xf32>
    %2 = vector.shape_cast %1 : vector<1x3x128xf32> to vector<3x128xf32>
    %cst = arith.constant dense<0.000000e+00> : vector<64x128xf32>
    %3 = tpu.matmul %0, %2, %cst {dimension_numbers = #tpu.dot_dimension_numbers<[1], [0], [0], [1], [0, 0, 1, 1], [], []>} : vector<64x3xf32>, vector<3x128xf32>, vector<64x128xf32> -> vector<64x128xf32>
    %c0_4 = arith.constant 0 : index
    %c0_5 = arith.constant 0 : index
    %4 = vector.load %arg4[%c0_4, %c0_5] : memref<64x1xf32, #tpu.memory_space<vmem>>, vector<64x1xf32>
    %5 = vector.broadcast %4 : vector<64x1xf32> to vector<64x128xf32>
    %6 = arith.addf %3, %5 : vector<64x128xf32>
    %c0_6 = arith.constant 0 : index
    %c0_7 = arith.constant 0 : index
    %c0_8 = arith.constant 0 : index
    %7 = vector.load %arg5[%c0_6, %c0_7, %c0_8] : memref<1x64x128xf32, #tpu.memory_space<vmem>>, vector<1x64x128xf32>
    %8 = vector.shape_cast %7 : vector<1x64x128xf32> to vector<64x128xf32>
    %9 = vector.shape_cast %6 : vector<64x128xf32> to vector<1x64x128xf32>
    tpu.vector_store %arg5[%c0_6, %c0_7, %c0_8], %9 {strides = array<i32>} : memref<1x64x128xf32, #tpu.memory_space<vmem>>, vector<1x64x128xf32>,
    return
  }
  func.func @transform_0(%arg0: i32, %arg1: i32) -> (i32, i32, i32) {
    %c0_i32 = arith.constant 0 : i32
    %c0_i32_0 = arith.constant 0 : i32
    return %arg0, %c0_i32, %arg1 : i32, i32, i32
  }
  func.func @transform_1(%arg0: i32, %arg1: i32) -> (i32, i32) {
    %c0_i32 = arith.constant 0 : i32
    %c0_i32_0 = arith.constant 0 : i32
    %c0_i32_1 = arith.constant 0 : i32
    return %c0_i32, %c0_i32_0 : i32, i32
  }
  func.func @transform_2(%arg0: i32, %arg1: i32) -> (i32, i32) {
    %c0_i32 = arith.constant 0 : i32
    %c0_i32_0 = arith.constant 0 : i32
    %c0_i32_1 = arith.constant 0 : i32
    return %c0_i32, %c0_i32_0 : i32, i32
  }
  func.func @transform_3(%arg0: i32, %arg1: i32) -> (i32, i32, i32) {
    %c0_i32 = arith.constant 0 : i32
    %c0_i32_0 = arith.constant 0 : i32
    return %arg0, %c0_i32, %arg1 : i32, i32, i32
  }
}

</mosaic_0001>

<llo_original>
// kernel: testnet_forward.1
$region0: #{testnet_forward.1}
  #allocation0 [shape = 'u32[]', space=smem, size = 0x4, offset = 0x4, fixed_abs, tag = 'smem constant byte address 0x4 - core index']
  #allocation1 [shape = 'u32[144,128]{1,0:T(1,128)}', space=vmem, size = 0x12000, scoped, tag = 'internal scratch']
  %s0 = inlined_call_operand.vmem [shape: f32[2,3,128], index: 0, kind: input, shape index: {}]
  %s1 = inlined_call_operand.vmem [shape: f32[64,3], index: 1, kind: input, shape index: {}]
  %s2 = inlined_call_operand.vmem [shape: f32[64,1], index: 2, kind: input, shape index: {}]
  %s3 = inlined_call_operand.hbm [shape: f32[2,64,128], index: 3, kind: output, shape index: {}]
  %s4 = sld [smem:[#allocation0]]
  $region45: #{testnet_forward.1} parent=0
    _
  %s6 = ssub.s32 1, %s4
  %s7 = scalar_select 0, %s6, %s4
  $region1: #{testnet_forward.1} parent=0
    #allocation2 [shape = 'u8[65536]{0}', space=vmem, size = 0x10000, scoped, tag = 'output window, operand 0']
    #allocation3 [shape = 's32[2]{0}', space=sflag, size = 0x8, scoped, tag = 'scoped memory for testnet_forward.1']
    %8 = vsyncpa [#allocation3], 0
    %s9 = scalar_lea.sflag [#allocation3], 1
    %10 = vsyncpa %s9, 0
    loop: start=0, step=1, limit=4
    $region2: #{testnet_forward.1} parent=1 // loop_pre_header
      _
    $region3: #{testnet_forward.1} parent=1 // loop_header
      %s12 = sphi 0, %s16
      %p13 = scmp.ge.s32.totalorder %s12, 4
      %s19 = sphi 0, %s31
      %s20 = sphi 0, %s27
      %s21 = sphi 0, %s19
      %s22 = sphi 0, %s20
      %s23 = sphi 0, %s21
      %s24 = sphi 0, %s22
      %s36 = sphi 0, %s38
      %s39 = sphi 0, %s36
      %s40 = sphi 0, %s39
      %s56 = sphi 0, %s40
      %s60 = sphi 0, %s60
      %s62 = sphi 0, %s60
      %s63 = sphi 0, %s62
      %s77 = sphi 0, %s63
      %s81 = sphi 0, %s81
      %s83 = sphi 0, %s81
      %s84 = sphi 0, %s83
      %s98 = sphi 0, %s84
      %s106 = sphi 0, %s108
      %s109 = sphi 0, %s106
      %s110 = sphi 0, %s109
      %s126 = sphi 0, %s110
    $region4: #{testnet_forward.1} parent=1 // loop_header_branch
      %15 = sbr.rel (%p13) target = $region8
    $region5: #{testnet_forward.1} parent=1 // loop_body
      %s17 = ssub.s32 %s12, 1
      %s18 = ssub.s32 %s12, 2
      %s25 = sadd.s32 1, %s20
      %p26 = scmp.ge.s32.totalorder %s25, 1
      %s27 = scalar_select %p26, 0, %s25
      %s28 = sadd.s32 1, %s19
      %s29 = scalar_select %p26, %s28, %s19
      %p30 = scmp.ge.s32.totalorder %s29, 2
      %s31 = scalar_select %p30, 0, %s29
      %s32 = ssub.s32 %s19, %s31
      %s33 = ssub.s32 %s20, %s27
      %s34 = sor.u32 %s32, %s33
      %p35 = scmp.eq.s32.totalorder %s34, 0
      %s37 = sadd.s32 %s36, 1
      %s38 = scalar_select %p35, %s36, %s37
      %p41 = pneg %p35
      %p42 = scmp.eq.s32.totalorder %s12, 1
      %p43 = por %p41, %p42
      %p44 = scmp.ne.s32.totalorder %s36, %s39
      %p45 = scmp.eq.s32.totalorder %s12, 0
      %p46 = por %p44, %p45
      %p47 = scmp.ne.s32.totalorder %s36, %s39
      %p48 = scmp.eq.s32.totalorder %s17, 1
      %p49 = por %p47, %p48
      %p50 = scmp.ne.s32.totalorder %s39, %s40
      %p51 = scmp.eq.s32.totalorder %s17, 0
      %p52 = por %p50, %p51
      %p53 = scmp.ne.s32.totalorder %s39, %s40
      %p54 = scmp.eq.s32.totalorder %s18, 1
      %p55 = por %p53, %p54
      %p57 = scmp.ne.s32.totalorder %s40, %s56
      %p58 = scmp.eq.s32.totalorder %s18, 0
      %p59 = por %p57, %p58
      %s61 = sadd.s32 %s60, 1
      %p64 = scmp.eq.s32.totalorder %s12, 1
      %p65 = scmp.ne.s32.totalorder %s60, %s62
      %p66 = scmp.eq.s32.totalorder %s12, 0
      %p67 = por %p65, %p66
      %p68 = scmp.ne.s32.totalorder %s60, %s62
      %p69 = scmp.eq.s32.totalorder %s17, 1
      %p70 = por %p68, %p69
      %p71 = scmp.ne.s32.totalorder %s62, %s63
      %p72 = scmp.eq.s32.totalorder %s17, 0
      %p73 = por %p71, %p72
      %p74 = scmp.ne.s32.totalorder %s62, %s63
      %p75 = scmp.eq.s32.totalorder %s18, 1
      %p76 = por %p74, %p75
      %p78 = scmp.ne.s32.totalorder %s63, %s77
      %p79 = scmp.eq.s32.totalorder %s18, 0
      %p80 = por %p78, %p79
      %s82 = sadd.s32 %s81, 1
      %p85 = scmp.eq.s32.totalorder %s12, 1
      %p86 = scmp.ne.s32.totalorder %s81, %s83
      %p87 = scmp.eq.s32.totalorder %s12, 0
      %p88 = por %p86, %p87
      %p89 = scmp.ne.s32.totalorder %s81, %s83
      %p90 = scmp.eq.s32.totalorder %s17, 1
      %p91 = por %p89, %p90
      %p92 = scmp.ne.s32.totalorder %s83, %s84
      %p93 = scmp.eq.s32.totalorder %s17, 0
      %p94 = por %p92, %p93
      %p95 = scmp.ne.s32.totalorder %s83, %s84
      %p96 = scmp.eq.s32.totalorder %s18, 1
      %p97 = por %p95, %p96
      %p99 = scmp.ne.s32.totalorder %s84, %s98
      %p100 = scmp.eq.s32.totalorder %s18, 0
      %p101 = por %p99, %p100
      %s102 = ssub.s32 %s19, %s31
      %s103 = ssub.s32 %s20, %s27
      %s104 = sor.u32 %s102, %s103
      %p105 = scmp.eq.s32.totalorder %s104, 0
      %s107 = sadd.s32 %s106, 1
      %s108 = scalar_select %p105, %s106, %s107
      %p111 = pneg %p105
      %p112 = scmp.eq.s32.totalorder %s12, 1
      %p113 = por %p111, %p112
      %p114 = scmp.ne.s32.totalorder %s106, %s109
      %p115 = scmp.eq.s32.totalorder %s12, 0
      %p116 = por %p114, %p115
      %p117 = scmp.ne.s32.totalorder %s106, %s109
      %p118 = scmp.eq.s32.totalorder %s17, 1
      %p119 = por %p117, %p118
      %p120 = scmp.ne.s32.totalorder %s109, %s110
      %p121 = scmp.eq.s32.totalorder %s17, 0
      %p122 = por %p120, %p121
      %p123 = scmp.ne.s32.totalorder %s109, %s110
      %p124 = scmp.eq.s32.totalorder %s18, 1
      %p125 = por %p123, %p124
      %p127 = scmp.ne.s32.totalorder %s110, %s126
      %p128 = scmp.eq.s32.totalorder %s18, 0
      %p129 = por %p127, %p128
      %p130 = scmp.le.s32.totalorder 1, %s12
      %p131 = scmp.lt.s32.totalorder %s12, 3
      %p132 = pnand %p130, %p131
      %p133 = pneg %p132
      // Predicated region
      $region9: #{testnet_forward.1} parent=5 // pred_check
        _
      $region10: #{testnet_forward.1} parent=5 // pred_check_branch
        %135 = sbr.rel (%p132) target = $region12
      $region11: #{testnet_forward.1} parent=5 // pred_region
        %s136 = ssub.s32 %s12, 1
        // Predicated region
        $region13: #{testnet_forward.1} parent=11 // pred_check
          %p137 = pneg %p73
        $region14: #{testnet_forward.1} parent=11 // pred_check_branch
          %139 = sbr.rel (%p137) target = $region16
        $region15: #{testnet_forward.1} parent=11 // pred_region
          _
        $region16: #{testnet_forward.1} parent=11 // pred_fallthru
          _
        // Predicated region
        $region17: #{testnet_forward.1} parent=11 // pred_check
          %p140 = pneg %p94
        $region18: #{testnet_forward.1} parent=11 // pred_check_branch
          %142 = sbr.rel (%p140) target = $region20
        $region19: #{testnet_forward.1} parent=11 // pred_region
          _
        $region20: #{testnet_forward.1} parent=11 // pred_fallthru
          _
      $region12: #{testnet_forward.1} parent=5 // pred_fallthru
        _
      %p143 = scmp.lt.s32.totalorder %s12, 2
      // Predicated region
      $region21: #{testnet_forward.1} parent=5 // pred_check
        %p144 = pneg %p143
      $region22: #{testnet_forward.1} parent=5 // pred_check_branch
        %146 = sbr.rel (%p144) target = $region24
      $region23: #{testnet_forward.1} parent=5 // pred_region
        // Predicated region
        $region25: #{testnet_forward.1} parent=23 // pred_check
          %p147 = pneg %p46
        $region26: #{testnet_forward.1} parent=23 // pred_check_branch
          %149 = sbr.rel (%p147) target = $region28
        $region27: #{testnet_forward.1} parent=23 // pred_region
          %p150 = scmp.lt.s32.totalorder %s19, 1
          %s151 = scalar_select %p150, %s19, 1
          %p152 = scmp.lt.s32.totalorder %s20, 0
          %s153 = scalar_select %p152, %s20, 0
          %s154 = sadd.s32 %s153, %s151
          %s155 = smul.addr %s154, 4
          %s156 = scalar_lea.vmem %s0, %s155
        $region28: #{testnet_forward.1} parent=23 // pred_fallthru
          _
      $region24: #{testnet_forward.1} parent=5 // pred_fallthru
        _
      %p157 = scmp.le.s32.totalorder 1, %s12
      %p158 = scmp.lt.s32.totalorder %s12, 3
      %p159 = pnand %p157, %p158
      %p160 = pneg %p159
      // Predicated region
      $region29: #{testnet_forward.1} parent=5 // pred_check
        _
      $region30: #{testnet_forward.1} parent=5 // pred_check_branch
        %162 = sbr.rel (%p159) target = $region32
      $region31: #{testnet_forward.1} parent=5 // pred_region
        %s163 = ssub.s32 %s12, 1
        %p164 = scmp.lt.s32.totalorder %s21, 1
        %s165 = scalar_select %p164, %s21, 1
        %p166 = scmp.lt.s32.totalorder %s22, 0
        %s167 = scalar_select %p166, %s22, 0
        %s168 = sadd.s32 %s167, %s165
        %s169 = smul.addr %s168, 4
        %s170 = scalar_lea.vmem %s0, %s169
        %p171 = pneg %p52
        %p172 = pneg %p49
        %p173 = pneg %p73
        %p174 = pneg %p70
        %p175 = pneg %p94
        %p176 = pneg %p91
        %p177 = pneg %p122
        %p178 = pneg %p119
        %s179 = sand.u32 %s109, 1
        %s180 = scalar_lea.sflag [#allocation3], %s179
        %s181 = sand.u32 %s109, 1
        %s182 = smul.addr %s181, 64
        %s183 = scalar_lea.vmem [#allocation2], %s182
        %p184 = scmp.lt.s32.totalorder %s21, 1
        %s185 = scalar_select %p184, %s21, 1
        %p186 = scmp.lt.s32.totalorder %s22, 0
        %s187 = scalar_select %p186, %s22, 0
        %s188 = sadd.s32 %s187, %s185
        %s189 = smul.addr %s188, 4
        %s190 = scalar_lea.vmem %s0, %s189
        %v191 = vld [vmem:[%s1] sm:$0xff]
        %v192 = vld [vmem:[%s1 + $0x8] sm:$0xff]
        %v193 = vld [vmem:[%s1 + $0x10] sm:$0xff]
        %v194 = vld [vmem:[%s1 + $0x18] sm:$0xff]
        %v195 = vld [vmem:[%s1 + $0x20] sm:$0xff]
        %v196 = vld [vmem:[%s1 + $0x28] sm:$0xff]
        %v197 = vld [vmem:[%s1 + $0x30] sm:$0xff]
        %v198 = vld [vmem:[%s1 + $0x38] sm:$0xff]
        %v199 = vld [vmem:[%s190] sm:$0x7]
        %v200 = vld [vmem:[%s2] sm:$0xff]
        %v201 = vld [vmem:[%s2 + $0x8] sm:$0xff]
        %v202 = vld [vmem:[%s2 + $0x10] sm:$0xff]
        %v203 = vld [vmem:[%s2 + $0x18] sm:$0xff]
        %v204 = vld [vmem:[%s2 + $0x20] sm:$0xff]
        %v205 = vld [vmem:[%s2 + $0x28] sm:$0xff]
        %v206 = vld [vmem:[%s2 + $0x30] sm:$0xff]
        %v207 = vld [vmem:[%s2 + $0x38] sm:$0xff]
        %209 = vset.pattern.permute.xlu0 0
        %210 = vperm.xlu0 %209, %v200
        %v211 = vpop.permute.xlu0 %210
        %214 = vset.pattern.permute.xlu0 0
        %215 = vperm.xlu0 %214, %v201
        %v216 = vpop.permute.xlu0 %215
        %219 = vset.pattern.permute.xlu0 0
        %220 = vperm.xlu0 %219, %v202
        %v221 = vpop.permute.xlu0 %220
        %224 = vset.pattern.permute.xlu0 0
        %225 = vperm.xlu0 %224, %v203
        %v226 = vpop.permute.xlu0 %225
        %229 = vset.pattern.permute.xlu0 0
        %230 = vperm.xlu0 %229, %v204
        %v231 = vpop.permute.xlu0 %230
        %234 = vset.pattern.permute.xlu0 0
        %235 = vperm.xlu0 %234, %v205
        %v236 = vpop.permute.xlu0 %235
        %239 = vset.pattern.permute.xlu0 0
        %240 = vperm.xlu0 %239, %v206
        %v241 = vpop.permute.xlu0 %240
        %244 = vset.pattern.permute.xlu0 0
        %245 = vperm.xlu0 %244, %v207
        %v246 = vpop.permute.xlu0 %245
        %vm248 = vcmask 23552
        %v250 = vsel %vm248, %v191, 0
        %v253 = vsel %vm248, %v192, 0
        %v256 = vsel %vm248, %v193, 0
        %v259 = vsel %vm248, %v194, 0
        %v262 = vsel %vm248, %v195, 0
        %v265 = vsel %vm248, %v196, 0
        %v268 = vsel %vm248, %v197, 0
        %v271 = vsel %vm248, %v198, 0
        %vm273 = vcmask 1042432
        %v275 = vsel %vm273, %v199, 0
        %277 = vmatprep.subr.mxu0 0.0
        %278 = vmatpush1.msra.mxu0 0.0
        %279 = vmatprep.subr.mxu0 0.0
        %280 = vmatpush1.msra.mxu0 0.0
        %281 = vmatprep.subr.mxu0 0.0
        %282 = vmatpush1.msra.mxu0 0.0
        %283 = vmatprep.subr.mxu0 0.0
        %284 = vmatpush1.msra.mxu0 0.0
        %285 = vmatprep.subr.mxu0 0.0
        %286 = vmatpush1.msra.mxu0 0.0
        %287 = vmatprep.subr.mxu0 0.0
        %288 = vmatpush1.msra.mxu0 0.0
        %289 = vmatprep.subr.mxu0 0.0
        %290 = vmatpush1.msra.mxu0 0.0
        %291 = vmatprep.subr.mxu0 0.0
        %292 = vmatpush1.msra.mxu0 0.0
        %293 = vmatprep.subr.mxu0 0.0
        %294 = vmatpush1.msra.mxu0 0.0
        %295 = vmatprep.subr.mxu0 0.0
        %296 = vmatpush1.msra.mxu0 0.0
        %297 = vmatprep.subr.mxu0 0.0
        %298 = vmatpush1.msra.mxu0 0.0
        %299 = vmatprep.subr.mxu0 0.0
        %300 = vmatpush1.msra.mxu0 0.0
        %301 = vmatprep.subr.mxu0 0.0
        %302 = vmatpush1.msra.mxu0 0.0
        %303 = vmatprep.subr.mxu0 0.0
        %304 = vmatpush1.msra.mxu0 0.0
        %305 = vmatprep.subr.mxu0 0.0
        %306 = vmatpush1.msra.mxu0 0.0
        %307 = vmatprep.subr.mxu0 0.0
        %308 = vmatpush1.msra.mxu0 %v275
        %309 = vmatprep.subr.mxu0 0.0
        %310 = vmatpush2.msra.mxu0 0.0
        %311 = vmatprep.subr.mxu0 0.0
        %312 = vmatpush2.msra.mxu0 0.0
        %313 = vmatprep.subr.mxu0 0.0
        %314 = vmatpush2.msra.mxu0 0.0
        %315 = vmatprep.subr.mxu0 0.0
        %316 = vmatpush2.msra.mxu0 0.0
        %317 = vmatprep.subr.mxu0 0.0
        %318 = vmatpush2.msra.mxu0 0.0
        %319 = vmatprep.subr.mxu0 0.0
        %320 = vmatpush2.msra.mxu0 0.0
        %321 = vmatprep.subr.mxu0 0.0
        %322 = vmatpush2.msra.mxu0 0.0
        %323 = vmatprep.subr.mxu0 0.0
        %324 = vmatpush2.msra.mxu0 0.0
        %325 = vmatprep.subr.mxu0 0.0
        %326 = vmatpush2.msra.mxu0 0.0
        %327 = vmatprep.subr.mxu0 0.0
        %328 = vmatpush2.msra.mxu0 0.0
        %329 = vmatprep.subr.mxu0 0.0
        %330 = vmatpush2.msra.mxu0 0.0
        %331 = vmatprep.subr.mxu0 0.0
        %332 = vmatpush2.msra.mxu0 0.0
        %333 = vmatprep.subr.mxu0 0.0
        %334 = vmatpush2.msra.mxu0 0.0
        %335 = vmatprep.subr.mxu0 0.0
        %336 = vmatpush2.msra.mxu0 0.0
        %337 = vmatprep.subr.mxu0 0.0
        %338 = vmatpush2.msra.mxu0 0.0
        %339 = vmatprep.subr.mxu0 0.0
        %340 = vmatpush2.msra.mxu0 0.0
        %341 = vmatprep.mubr.f32.mxu0 0.0
        %342 = vmatmul.mubr.f32.gmra.mxu0 %v250
        %v343 = vpop.f32.mrf.mxu0
        %v344 = vadd.f32 %v211, %v343
        %v345 = vpop.f32.mrf.mxu0
        %346 = vmatprep.mubr.f32.mxu0 0.0
        %347 = vmatmul.mubr.f32.gmra.mxu0 %v253
        %v348 = vpop.f32.mrf.mxu0
        %v349 = vadd.f32 %v216, %v348
        %v350 = vpop.f32.mrf.mxu0
        %351 = vmatprep.mubr.f32.mxu0 0.0
        %352 = vmatmul.mubr.f32.gmra.mxu0 %v256
        %v353 = vpop.f32.mrf.mxu0
        %v354 = vadd.f32 %v221, %v353
        %v355 = vpop.f32.mrf.mxu0
        %356 = vmatprep.mubr.f32.mxu0 0.0
        %357 = vmatmul.mubr.f32.gmra.mxu0 %v259
        %v358 = vpop.f32.mrf.mxu0
        %v359 = vadd.f32 %v226, %v358
        %v360 = vpop.f32.mrf.mxu0
        %361 = vmatprep.mubr.f32.mxu0 0.0
        %362 = vmatmul.mubr.f32.gmra.mxu0 %v262
        %v363 = vpop.f32.mrf.mxu0
        %v364 = vadd.f32 %v231, %v363
        %v365 = vpop.f32.mrf.mxu0
        %366 = vmatprep.mubr.f32.mxu0 0.0
        %367 = vmatmul.mubr.f32.gmra.mxu0 %v265
        %v368 = vpop.f32.mrf.mxu0
        %v369 = vadd.f32 %v236, %v368
        %v370 = vpop.f32.mrf.mxu0
        %371 = vmatprep.mubr.f32.mxu0 0.0
        %372 = vmatmul.mubr.f32.gmra.mxu0 %v268
        %v373 = vpop.f32.mrf.mxu0
        %v374 = vadd.f32 %v241, %v373
        %v375 = vpop.f32.mrf.mxu0
        %376 = vmatprep.mubr.f32.mxu0 0.0
        %377 = vmatmul.mubr.f32.gmra.mxu0 %v271
        %v378 = vpop.f32.mrf.mxu0
        %v379 = vadd.f32 %v246, %v378
        %v380 = vpop.f32.mrf.mxu0
        %381 = vdwg.mxu0
        %382 = vst [vmem:[%s183] sm:$0xff] %v344
        %383 = vst [vmem:[%s183 + $0x8] sm:$0xff] %v349
        %384 = vst [vmem:[%s183 + $0x10] sm:$0xff] %v354
        %385 = vst [vmem:[%s183 + $0x18] sm:$0xff] %v359
        %386 = vst [vmem:[%s183 + $0x20] sm:$0xff] %v364
        %387 = vst [vmem:[%s183 + $0x28] sm:$0xff] %v369
        %388 = vst [vmem:[%s183 + $0x30] sm:$0xff] %v374
        %389 = vst [vmem:[%s183 + $0x38] sm:$0xff] %v379
        %s390 = sand.u32 %s109, 1
        %s391 = scalar_lea.sflag [#allocation3], %s390
        %s392 = sand.u32 %s109, 1
        %s393 = smul.addr %s392, 64
        %s394 = scalar_lea.vmem [#allocation2], %s393
        // Predicated region
        $region33: #{testnet_forward.1} parent=31 // pred_check
          %p395 = pneg %p119
        $region34: #{testnet_forward.1} parent=31 // pred_check_branch
          %397 = sbr.rel (%p395) target = $region36
        $region35: #{testnet_forward.1} parent=31 // pred_region
          %s399 = ssub.s32 1024, 1024
          %400 = vsyncadd %s391, %s399
          %s401 = smul.addr %s21, 8
          %s402 = sadd.s32 %s22, %s401
          %s403 = smul.addr %s402, 128
          %s404 = scalar_lea.hbm %s3, %s403
          %s405 = sshll.u32 %s394, 4
          %s406 = int_to_ptr.vmem [resolvable:$true] %s405
          %411 = dma.vmem_to_hbm [thread:$0]  %s406, 1024, %s404, %s391, 128, 128, 8
        $region36: #{testnet_forward.1} parent=31 // pred_fallthru
          _
      $region32: #{testnet_forward.1} parent=5 // pred_fallthru
        _
      %p412 = scmp.le.s32.totalorder 2, %s12
      // Predicated region
      $region37: #{testnet_forward.1} parent=5 // pred_check
        %p413 = pneg %p412
      $region38: #{testnet_forward.1} parent=5 // pred_check_branch
        %415 = sbr.rel (%p413) target = $region40
      $region39: #{testnet_forward.1} parent=5 // pred_region
        %s416 = ssub.s32 %s12, 2
        // Predicated region
        $region41: #{testnet_forward.1} parent=39 // pred_check
          %p417 = pneg %p125
        $region42: #{testnet_forward.1} parent=39 // pred_check_branch
          %419 = sbr.rel (%p417) target = $region44
        $region43: #{testnet_forward.1} parent=39 // pred_region
          %s420 = sand.u32 %s110, 1
          %s421 = scalar_lea.sflag [#allocation3], %s420
          %s422 = sand.u32 %s110, 1
          %s423 = smul.addr %s422, 64
          %s424 = scalar_lea.vmem [#allocation2], %s423
          %425 = dma.done %s421, 1024
        $region44: #{testnet_forward.1} parent=39 // pred_fallthru
          _
      $region40: #{testnet_forward.1} parent=5 // pred_fallthru
        _
    $region6: #{testnet_forward.1} parent=1 // loop_footer
      %s16 = sadd.s32 1, %s12
    $region7: #{testnet_forward.1} parent=1 // loop_footer_branch
      %11 = sbr.rel target = $region3
    $region8: #{testnet_forward.1} parent=1 // loop_exit
      _
    %426 = vsyncpa [#allocation3], 1
    %s427 = scalar_lea.sflag [#allocation3], 1
    %428 = vsyncpa %s427, 1

</llo_original>
